<compile_context>
chip_gen: v6e
topology: v6e:2x2x1
jax: 0.10.0
libtpu: 0.0.40
codegen_flags: <defaults>
</compile_context>

<pallas_src>
import functools

import jax
import jax.numpy as jnp
from jax import lax
from jax.experimental import pallas as pl
from jax.experimental.pallas import tpu as pltpu


_LANE = 128


def _round_up(v, m):
    return ((v + m - 1) // m) * m


def _plan_k(hw, bc, itemsize):
    """K padding / tiling / megacore-split plan for the Gram contraction."""
    kp = _round_up(hw, _LANE)
    # Budget: double-buffered (bc, tk) feature blocks <= ~8 MiB so the whole
    # pipeline fits v5e's 16 MiB scoped-VMEM default without flags.
    budget = 8 * 1024 * 1024
    cap = (budget // max(1, 2 * bc * itemsize)) // _LANE * _LANE
    cap = max(_LANE, min(cap, 2048, kp))
    # Largest multiple of 128 that divides kp and is <= cap (exact grid).
    tk = _LANE
    t = _LANE
    while t <= cap:
        if kp % t == 0:
            tk = t
        t += _LANE
    gk = kp // tk
    # Leading parallel axis: split K across the 2 TensorCores on v7x when the
    # K grid splits evenly; harmless (serial) on single-core v5e/v6e.
    nsplit = 2 if (gk >= 2 and gk % 2 == 0) else 1
    return kp, tk, gk, nsplit


# ---------------------------------------------------------------------------
# Kernel: partial Gram over one K slice, accumulated across the K grid axis.
# ---------------------------------------------------------------------------
def _partial_gram_kernel(f_ref, g_ref, acc_ref, *, scale):
    # f_ref: (bc, tk) features (native dtype); g_ref: (bc, bc) f32 output for
    # this core's K half; acc_ref: (bc, bc) f32 VMEM accumulator.
    k = pl.program_id(1)
    f = f_ref[...]
    # Contract the last dims of F with itself (== F F^T); f32 accumulation on
    # the MXU, no transpose ever materialized in VMEM.
    part = lax.dot_general(
        f, f,
        dimension_numbers=(((1,), (1,)), ((), ())),
        preferred_element_type=jnp.float32)

    @pl.when(k == 0)
    def _():
        acc_ref[...] = part            # first step writes directly: no zero-fill

    @pl.when(k != 0)
    def _():
        acc_ref[...] += part

    @pl.when(k == pl.num_programs(1) - 1)
    def _():
        g_ref[...] = acc_ref[...] * scale


# ---------------------------------------------------------------------------
# Wrappers
# ---------------------------------------------------------------------------
def _partial_grams(x):
    """(b,c,h,w) -> (nsplit, bc, bc) f32 scaled partial Grams (sum over axis 0
    gives G = F F^T / (b*c*h*w))."""
    b, c, h, w = x.shape
    bc, hw = b * c, h * w
    f = x.reshape(bc, hw)                      # native dtype, no upcast
    kp, tk, gk, nsplit = _plan_k(hw, bc, jnp.dtype(x.dtype).itemsize)
    if kp != hw:
        # Zero K-tail padding only (inert for the Gram); no M padding at all.
        f = jnp.pad(f, ((0, 0), (0, kp - hw)))
    gk_per = gk // nsplit
    scale = 1.0 / float(bc * hw)

    return pl.pallas_call(
        functools.partial(_partial_gram_kernel, scale=scale),
        out_shape=jax.ShapeDtypeStruct((nsplit, bc, bc), jnp.float32),
        grid_spec=pltpu.PrefetchScalarGridSpec(
            num_scalar_prefetch=0,
            grid=(nsplit, gk_per),
            in_specs=[
                # Single operand: F is streamed from HBM exactly once per chip.
                pl.BlockSpec((bc, tk), lambda p, k: (0, p * gk_per + k)),
            ],
            # One (bc, bc) block per core, resident across the K sweep.
            out_specs=pl.BlockSpec((None, bc, bc), lambda p, k: (p, 0, 0)),
            scratch_shapes=[pltpu.VMEM((bc, bc), jnp.float32)],
        ),
        compiler_params=pltpu.CompilerParams(
            dimension_semantics=("parallel", "arbitrary")),
    )(f)


def gram_matrix(x):
    """Pallas Gram matrix matching the PyTorch reference: (b*c, b*c)."""
    g = jnp.sum(_partial_grams(x), axis=0)
    return g.astype(x.dtype)


def style_loss(x, target_gram):
    """mse(gram_matrix(x), target_gram); the h*w contraction runs in Pallas,
    the tiny (bc, bc) epilogue (partial-sum + squared difference) in XLA."""
    g = jnp.sum(_partial_grams(x), axis=0)                 # f32 (bc, bc)
    d = g - target_gram.astype(jnp.float32)
    return jnp.mean(d * d)


class StyleLoss:
    """JAX/Pallas port of the PyTorch StyleLoss module (forward pass)."""

    def __init__(self, target_feature):
        # .detach() in PyTorch -> stop_gradient here.
        self.target = lax.stop_gradient(gram_matrix(target_feature))
        self.loss = None

    def __call__(self, x):
        # TODO(synk): storing the loss on `self` mirrors the PyTorch module but
        # is not jit/grad friendly; prefer the functional style_loss(x, target).
        self.loss = style_loss(x, self.target)
        return x  # forward returns the input unchanged


# ---------------------------------------------------------------------------
# Reference (pure JAX) for sanity checking
# ---------------------------------------------------------------------------
def _gram_ref(x):
    b, c, h, w = x.shape
    f = x.reshape(b * c, h * w).astype(jnp.float32)
    g = lax.dot_general(f, f, (((1,), (1,)), ((), ())),
                        precision=lax.Precision.HIGHEST,
                        preferred_element_type=jnp.float32)
    return g / (b * c * h * w)


if __name__ == "__main__":
    key = jax.random.PRNGKey(0)
    k1, k2, k3, k4, k5, k6 = jax.random.split(key, 6)

    # ---- Primary demo shape consistent with the module (batch=2, channels=4,
    # spatial=16): bc=8, hw=256 -> single K block, nsplit=1. ----
    b, c, h, w = 2, 4, 16, 16
    target_feature = jax.random.normal(k1, (b, c, h, w), dtype=jnp.float32)
    x = jax.random.normal(k2, (b, c, h, w), dtype=jnp.float32)

    module = StyleLoss(target_feature)
    out = jax.block_until_ready(module(x))
    loss = jax.block_until_ready(module.loss)

    g_ref = _gram_ref(x)
    t_ref = _gram_ref(target_feature)
    loss_ref = jnp.mean((g_ref - t_ref) ** 2)

    assert out.shape == x.shape and out.dtype == x.dtype
    assert jnp.array_equal(out, x), "forward must return the input unchanged"
    # Loose tolerances: the in-kernel MXU dot runs at default (bf16-pass)
    # precision while the reference uses Precision.HIGHEST.
    assert jnp.allclose(gram_matrix(x), g_ref, rtol=2e-2, atol=2e-3)
    assert jnp.allclose(module.target, t_ref, rtol=2e-2, atol=2e-3)
    assert jnp.allclose(loss, loss_ref, rtol=1e-1, atol=1e-8), (loss, loss_ref)

    # ---- Multi-K / megacore-split path: bc=160, hw=2304 -> gk=2, nsplit=2. ----
    b2, c2, h2, w2 = 1, 160, 48, 48
    tf2 = jax.random.normal(k3, (b2, c2, h2, w2), dtype=jnp.float32)
    x2 = jax.random.normal(k4, (b2, c2, h2, w2), dtype=jnp.float32)
    mod2 = StyleLoss(tf2)
    _ = jax.block_until_ready(mod2(x2))
    loss2 = jax.block_until_ready(mod2.loss)
    loss2_ref = jnp.mean((_gram_ref(x2) - _gram_ref(tf2)) ** 2)
    assert jnp.allclose(loss2, loss2_ref, rtol=1e-1, atol=1e-9), (loss2, loss2_ref)

    # ---- K-tail padding path: hw=225 (not a multiple of 128). ----
    b3, c3, h3, w3 = 1, 16, 15, 15
    tf3 = jax.random.normal(k5, (b3, c3, h3, w3), dtype=jnp.float32)
    x3 = jax.random.normal(k6, (b3, c3, h3, w3), dtype=jnp.float32)
    mod3 = StyleLoss(tf3)
    _ = jax.block_until_ready(mod3(x3))
    loss3 = jax.block_until_ready(mod3.loss)
    assert jnp.allclose(gram_matrix(x3), _gram_ref(x3), rtol=2e-2, atol=1e-3)
    loss3_ref = jnp.mean((_gram_ref(x3) - _gram_ref(tf3)) ** 2)
    assert jnp.allclose(loss3, loss3_ref, rtol=1e-1, atol=1e-9), (loss3, loss3_ref)

    print("KERNEL_OK")
</pallas_src>

<mosaic_0001>
module attributes {stable_mosaic.version = 11 : i64} {
  func.func @_partial_gram_kernel(%arg0: i32, %arg1: i32, %arg2: memref<8x256xf32, #tpu.memory_space<vmem>>, %arg3: memref<1x8x8xf32, #tpu.memory_space<vmem>>, %arg4: memref<8x8xf32, #tpu.memory_space<vmem>>) attributes {dimension_semantics = [#tpu.dimension_semantics<parallel>, #tpu.dimension_semantics<arbitrary>], iteration_bounds = array<i64: 1, 1>, scalar_prefetch = 0 : i64, scratch_operands = 1 : i64, tpu.core_type = #tpu.core_type<tc>, window_params = [{transform_indices = @transform_0, window_bounds = array<i64: 8, 256>}, {transform_indices = @transform_1, window_bounds = array<i64: 1, 8, 8>}]} {
    %c0 = arith.constant 0 : index
    %c0_0 = arith.constant 0 : index
    %0 = vector.load %arg2[%c0, %c0_0] : memref<8x256xf32, #tpu.memory_space<vmem>>, vector<8x256xf32>
    %cst = arith.constant dense<0.000000e+00> : vector<8x8xf32>
    %1 = tpu.matmul %0, %0, %cst {dimension_numbers = #tpu.dot_dimension_numbers<[1], [1], [0], [0], [0, 0, 1, 0], [], []>} : vector<8x256xf32>, vector<8x256xf32>, vector<8x8xf32> -> vector<8x8xf32>
    %c0_i32 = arith.constant 0 : i32
    %2 = arith.cmpi eq, %arg1, %c0_i32 : i32
    %3 = arith.extui %2 : i1 to i32
    %c0_i32_1 = arith.constant 0 : i32
    %4 = arith.cmpi ne, %3, %c0_i32_1 : i32
    scf.if %4 {
      %c0_6 = arith.constant 0 : index
      %c0_7 = arith.constant 0 : index
      %11 = vector.load %arg4[%c0_6, %c0_7] : memref<8x8xf32, #tpu.memory_space<vmem>>, vector<8x8xf32>
      tpu.vector_store %arg4[%c0_6, %c0_7], %1 {strides = array<i32>} : memref<8x8xf32, #tpu.memory_space<vmem>>, vector<8x8xf32>,
    } else {
    }
    %c0_i32_2 = arith.constant 0 : i32
    %5 = arith.cmpi ne, %arg1, %c0_i32_2 : i32
    %6 = arith.extui %5 : i1 to i32
    %c0_i32_3 = arith.constant 0 : i32
    %7 = arith.cmpi ne, %6, %c0_i32_3 : i32
    scf.if %7 {
      %c0_6 = arith.constant 0 : index
      %c0_7 = arith.constant 0 : index
      %11 = vector.load %arg4[%c0_6, %c0_7] : memref<8x8xf32, #tpu.memory_space<vmem>>, vector<8x8xf32>
      %12 = arith.addf %11, %1 : vector<8x8xf32>
      %c0_8 = arith.constant 0 : index
      %c0_9 = arith.constant 0 : index
      %13 = vector.load %arg4[%c0_8, %c0_9] : memref<8x8xf32, #tpu.memory_space<vmem>>, vector<8x8xf32>
      tpu.vector_store %arg4[%c0_8, %c0_9], %12 {strides = array<i32>} : memref<8x8xf32, #tpu.memory_space<vmem>>, vector<8x8xf32>,
    } else {
    }
    %c0_i32_4 = arith.constant 0 : i32
    %8 = arith.cmpi eq, %arg1, %c0_i32_4 : i32
    %9 = arith.extui %8 : i1 to i32
    %c0_i32_5 = arith.constant 0 : i32
    %10 = arith.cmpi ne, %9, %c0_i32_5 : i32
    scf.if %10 {
      %c0_6 = arith.constant 0 : index
      %c0_7 = arith.constant 0 : index
      %11 = vector.load %arg4[%c0_6, %c0_7] : memref<8x8xf32, #tpu.memory_space<vmem>>, vector<8x8xf32>
      %cst_8 = arith.constant 4.8828125E-4 : f32
      %12 = vector.broadcast %cst_8 : f32 to vector<8x8xf32>
      %13 = arith.mulf %11, %12 : vector<8x8xf32>
      %c0_9 = arith.constant 0 : index
      %c0_10 = arith.constant 0 : index
      %c0_11 = arith.constant 0 : index
      %14 = vector.load %arg3[%c0_9, %c0_10, %c0_11] : memref<1x8x8xf32, #tpu.memory_space<vmem>>, vector<1x8x8xf32>
      %15 = vector.shape_cast %14 : vector<1x8x8xf32> to vector<8x8xf32>
      %16 = vector.shape_cast %13 : vector<8x8xf32> to vector<1x8x8xf32>
      tpu.vector_store %arg3[%c0_9, %c0_10, %c0_11], %16 {strides = array<i32>} : memref<1x8x8xf32, #tpu.memory_space<vmem>>, vector<1x8x8xf32>,
    } else {
    }
    return
  }
  func.func @transform_0(%arg0: i32, %arg1: i32) -> (i32, i32) {
    %c1_i32 = arith.constant 1 : i32
    %0 = arith.muli %arg0, %c1_i32 : i32
    %1 = arith.addi %0, %arg1 : i32
    %c0_i32 = arith.constant 0 : i32
    %c0_i32_0 = arith.constant 0 : i32
    return %c0_i32, %1 : i32, i32
  }
  func.func @transform_1(%arg0: i32, %arg1: i32) -> (i32, i32, i32) {
    %c0_i32 = arith.constant 0 : i32
    %c0_i32_0 = arith.constant 0 : i32
    %c0_i32_1 = arith.constant 0 : i32
    return %arg0, %c0_i32, %c0_i32_0 : i32, i32, i32
  }
}

</mosaic_0001>

<llo_original>
// kernel: tpu_custom_call.1
$region0: #{tpu_custom_call.1}
  #allocation0 [shape = 'u32[]', space=smem, size = 0x4, offset = 0x4, fixed_abs, tag = 'smem constant byte address 0x4 - core index']
  #allocation1 [shape = 'u32[144,128]{1,0:T(1,128)}', space=vmem, size = 0x12000, scoped, tag = 'internal scratch']
  #allocation2 [shape = 'f32[8,8]{1,0:T(8,128)}', space=vmem, size = 0x1000, scoped, tag = 'scratch operand']
  %s0 = inlined_call_operand.hbm [shape: f32[8,256], index: 0, kind: input, shape index: {}]
  %s1 = inlined_call_operand.hbm [shape: f32[1,8,8], index: 1, kind: output, shape index: {}]
  %s2 = sld [smem:[#allocation0]]
  $region30: #{tpu_custom_call.1} parent=0
    _
  %s4 = ssub.s32 1, %s2
  %s5 = scalar_select 0, %s4, %s2
  $region1: #{tpu_custom_call.1} parent=0
    #allocation3 [shape = 'u8[8192]{0}', space=vmem, size = 0x2000, scoped, tag = 'input window, operand 0, single buffered']
    #allocation4 [shape = 's32[1]{0}', space=sflag, size = 0x4, scoped, tag = 'scoped memory for tpu_custom_call.1']
    #allocation5 [shape = 's32[1]{0}', space=sflag, size = 0x4, scoped, tag = 'scoped memory for tpu_custom_call.1']
    #allocation6 [shape = 'u8[4096]{0}', space=vmem, size = 0x1000, scoped, tag = 'output window, operand 0, single buffered']
    %6 = vsyncpa [#allocation4], 0
    %7 = vsyncpa [#allocation5], 0
    // Predicated region
    $region2: #{tpu_custom_call.1} parent=1 // pred_check
      _
    $region3: #{tpu_custom_call.1} parent=1 // pred_check_branch
      %9 = sbr.rel (0) target = $region5
    $region4: #{tpu_custom_call.1} parent=1 // pred_region
      %s10 = sadd.s32 0, 0
      %s11 = smul.u32 2, %s10
      %s13 = ssub.s32 256, 256
      %14 = vsyncadd [#allocation4], %s13
      %s15 = smul.addr %s11, 128
      %s16 = scalar_lea.hbm %s0, %s15
      %s18 = sshll.u32 [#allocation3], 4
      %s19 = int_to_ptr.vmem [resolvable:$true] %s18
      %21 = dma.hbm_to_vmem [thread:$0]  %s16, 256, %s19, [#allocation4]
    $region5: #{tpu_custom_call.1} parent=1 // pred_fallthru
      _
    // Predicated region
    $region6: #{tpu_custom_call.1} parent=1 // pred_check
      _
    $region7: #{tpu_custom_call.1} parent=1 // pred_check_branch
      %23 = sbr.rel (0) target = $region9
    $region8: #{tpu_custom_call.1} parent=1 // pred_region
      %24 = dma.done [#allocation4], 256
    $region9: #{tpu_custom_call.1} parent=1 // pred_fallthru
      _
    %s25 = sadd.s32 0, 0
    %s26 = smul.u32 2, %s25
    %v27 = vld [vmem:[#allocation3] sm:$0xff]
    %v28 = vld [vmem:[#allocation3 + $0x8] sm:$0xff]
    %29 = vmatprep.subr.mxu0 0.0
    %30 = vmatpush1.xpose.msra.mxu0 0.0
    %31 = vmatprep.subr.mxu0 0.0
    %32 = vmatpush1.xpose.msra.mxu0 0.0
    %33 = vmatprep.subr.mxu0 0.0
    %34 = vmatpush1.xpose.msra.mxu0 0.0
    %35 = vmatprep.subr.mxu0 0.0
    %36 = vmatpush1.xpose.msra.mxu0 0.0
    %37 = vmatprep.subr.mxu0 0.0
    %38 = vmatpush1.xpose.msra.mxu0 0.0
    %39 = vmatprep.subr.mxu0 0.0
    %40 = vmatpush1.xpose.msra.mxu0 0.0
    %41 = vmatprep.subr.mxu0 0.0
    %42 = vmatpush1.xpose.msra.mxu0 0.0
    %43 = vmatprep.subr.mxu0 0.0
    %44 = vmatpush1.xpose.msra.mxu0 0.0
    %45 = vmatprep.subr.mxu0 0.0
    %46 = vmatpush1.xpose.msra.mxu0 0.0
    %47 = vmatprep.subr.mxu0 0.0
    %48 = vmatpush1.xpose.msra.mxu0 0.0
    %49 = vmatprep.subr.mxu0 0.0
    %50 = vmatpush1.xpose.msra.mxu0 0.0
    %51 = vmatprep.subr.mxu0 0.0
    %52 = vmatpush1.xpose.msra.mxu0 0.0
    %53 = vmatprep.subr.mxu0 0.0
    %54 = vmatpush1.xpose.msra.mxu0 0.0
    %55 = vmatprep.subr.mxu0 0.0
    %56 = vmatpush1.xpose.msra.mxu0 0.0
    %57 = vmatprep.subr.mxu0 0.0
    %58 = vmatpush1.xpose.msra.mxu0 0.0
    %59 = vmatprep.subr.mxu0 %v28
    %60 = vmatpush1.xpose.msra.mxu0 %v27
    %61 = vmatprep.subr.mxu0 0.0
    %62 = vmatpush2.xpose.msra.mxu0 0.0
    %63 = vmatprep.subr.mxu0 0.0
    %64 = vmatpush2.xpose.msra.mxu0 0.0
    %65 = vmatprep.subr.mxu0 0.0
    %66 = vmatpush2.xpose.msra.mxu0 0.0
    %67 = vmatprep.subr.mxu0 0.0
    %68 = vmatpush2.xpose.msra.mxu0 0.0
    %69 = vmatprep.subr.mxu0 0.0
    %70 = vmatpush2.xpose.msra.mxu0 0.0
    %71 = vmatprep.subr.mxu0 0.0
    %72 = vmatpush2.xpose.msra.mxu0 0.0
    %73 = vmatprep.subr.mxu0 0.0
    %74 = vmatpush2.xpose.msra.mxu0 0.0
    %75 = vmatprep.subr.mxu0 0.0
    %76 = vmatpush2.xpose.msra.mxu0 0.0
    %77 = vmatprep.subr.mxu0 0.0
    %78 = vmatpush2.xpose.msra.mxu0 0.0
    %79 = vmatprep.subr.mxu0 0.0
    %80 = vmatpush2.xpose.msra.mxu0 0.0
    %81 = vmatprep.subr.mxu0 0.0
    %82 = vmatpush2.xpose.msra.mxu0 0.0
    %83 = vmatprep.subr.mxu0 0.0
    %84 = vmatpush2.xpose.msra.mxu0 0.0
    %85 = vmatprep.subr.mxu0 0.0
    %86 = vmatpush2.xpose.msra.mxu0 0.0
    %87 = vmatprep.subr.mxu0 0.0
    %88 = vmatpush2.xpose.msra.mxu0 0.0
    %89 = vmatprep.subr.mxu0 0.0
    %90 = vmatpush2.xpose.msra.mxu0 0.0
    %91 = vmatprep.subr.mxu0 0.0
    %92 = vmatpush2.xpose.msra.mxu0 0.0
    %93 = vmatprep.mubr.f32.mxu0 %v28
    %94 = vmatmul.mubr.f32.gmra.mxu0 %v27
    %v95 = vpop.f32.mrf.mxu0
    %v96 = vadd.f32 0.0, %v95
    %v97 = vpop.f32.mrf.mxu0
    %98 = vdwg.mxu0
    %p99 = scmp.eq.s32.totalorder 0, 0
    // Predicated region
    $region10: #{tpu_custom_call.1} parent=1 // pred_check
      %p100 = pneg %p99
    $region11: #{tpu_custom_call.1} parent=1 // pred_check_branch
      %102 = sbr.rel (%p100) target = $region13
    $region12: #{tpu_custom_call.1} parent=1 // pred_region
      %vm103 = vcmask 64512
      %104 = vst.msk [vmem:[#allocation2] sm:$0xff] %vm103, %v96
    $region13: #{tpu_custom_call.1} parent=1 // pred_fallthru
      _
    %p105 = scmp.ne.s32.totalorder 0, 0
    // Predicated region
    $region14: #{tpu_custom_call.1} parent=1 // pred_check
      %p106 = pneg %p105
    $region15: #{tpu_custom_call.1} parent=1 // pred_check_branch
      %108 = sbr.rel (%p106) target = $region17
    $region16: #{tpu_custom_call.1} parent=1 // pred_region
      %v109 = vld [vmem:[#allocation2] sm:$0xff]
      %v110 = vadd.f32 %v109, %v96
      %vm111 = vcmask 64512
      %112 = vst.msk [vmem:[#allocation2] sm:$0xff] %vm111, %v110
    $region17: #{tpu_custom_call.1} parent=1 // pred_fallthru
      _
    // Predicated region
    $region18: #{tpu_custom_call.1} parent=1 // pred_check
      %p113 = pneg %p99
    $region19: #{tpu_custom_call.1} parent=1 // pred_check_branch
      %115 = sbr.rel (%p113) target = $region21
    $region20: #{tpu_custom_call.1} parent=1 // pred_region
      %v116 = vld [vmem:[#allocation2] sm:$0xff]
      %v117 = vmul.f32 %v116, 0.00048828125
      %vm118 = vcmask 64512
      %119 = vst.msk [vmem:[#allocation6] sm:$0xff] %vm118, %v117
    $region21: #{tpu_custom_call.1} parent=1 // pred_fallthru
      _
    // Predicated region
    $region22: #{tpu_custom_call.1} parent=1 // pred_check
      _
    $region23: #{tpu_custom_call.1} parent=1 // pred_check_branch
      %121 = sbr.rel (0) target = $region25
    $region24: #{tpu_custom_call.1} parent=1 // pred_region
      %s123 = ssub.s32 128, 128
      %124 = vsyncadd [#allocation5], %s123
      %s126 = sshll.u32 [#allocation6], 4
      %s127 = int_to_ptr.vmem [resolvable:$true] %s126
      %129 = dma.vmem_to_hbm [thread:$0]  %s127, 128, %s1, [#allocation5]
    $region25: #{tpu_custom_call.1} parent=1 // pred_fallthru
      _
    // Predicated region
    $region26: #{tpu_custom_call.1} parent=1 // pred_check
      _
    $region27: #{tpu_custom_call.1} parent=1 // pred_check_branch
      %131 = sbr.rel (0) target = $region29
    $region28: #{tpu_custom_call.1} parent=1 // pred_region
      %132 = dma.done [#allocation5], 128
    $region29: #{tpu_custom_call.1} parent=1 // pred_fallthru
      _
    %133 = vsyncpa [#allocation4], 1
    %134 = vsyncpa [#allocation5], 1

</llo_original>
